<compile_context>
chip_gen: v6e
topology: v6e:2x2x1
jax: 0.10.0
libtpu: 0.0.40
codegen_flags: <defaults>
</compile_context>

<pallas_src>
import functools
import math

import jax
import jax.numpy as jnp
from jax.experimental import pallas as pl
from jax.experimental.pallas import tpu as pltpu


# ---------------------------------------------------------------------------
# Utilities
# ---------------------------------------------------------------------------
def _vmem_limit_bytes():
    """Per-generation VMEM budget: ~3/4 of physical, capped at 100 MiB
    (-> ~48 MiB on v7x's 64 MiB, ~96 MiB on v5e/v6e's 128 MiB)."""
    cap = 128 * 1024 * 1024
    try:
        info = pltpu.get_tpu_info()
        cap = int(getattr(info, "vmem_capacity_bytes", cap))
    except Exception:
        pass
    return int(min(cap * 3 // 4, 100 * 1024 * 1024))


def _tile(total, desired, align):
    """Largest divisor of `total` that is <= `desired` and a multiple of `align`.
    Falls back to the full dimension (always legal w.r.t. the (8,128) block rule)."""
    d = min(desired, total)
    for t in range(d, 0, -1):
        if total % t == 0 and t % align == 0:
            return t
    # TODO(synk): pad instead of falling back to one huge block for large non-divisible dims.
    return total


# ---------------------------------------------------------------------------
# Tiled projection matmul: (B, T, K) @ (K, N) -> (B, T, N)
# bf16 inputs (pre-cast by caller), f32 accumulation, tiled over M / N / K.
# ---------------------------------------------------------------------------
def _proj_kernel(x_ref, w_ref, o_ref, acc_ref):
    @pl.when(pl.program_id(3) == 0)
    def _init():
        acc_ref[...] = jnp.zeros_like(acc_ref)

    acc_ref[...] += jnp.dot(x_ref[...], w_ref[...],
                            preferred_element_type=jnp.float32)

    @pl.when(pl.program_id(3) == pl.num_programs(3) - 1)
    def _finalize():
        o_ref[...] = acc_ref[...].astype(o_ref.dtype)


def _batched_matmul(x, w, *, out_dtype, tm=256, tn=512, tk=2048):
    B, T, K = x.shape
    _, N = w.shape
    TM = _tile(T, tm, 8)       # second-minor: multiple of 8 (or full dim)
    TN = _tile(N, tn, 128)     # minor: multiple of 128 (or full dim)
    TK = _tile(K, tk, 128)
    grid = (B, T // TM, N // TN, K // TK)
    # TODO(synk): pipeline_mode=pl.Buffered(1) on the weight spec when it is resident
    # (K // TK == 1) to halve its VMEM footprint.
    return pl.pallas_call(
        _proj_kernel,
        out_shape=jax.ShapeDtypeStruct((B, T, N), out_dtype),
        grid_spec=pltpu.PrefetchScalarGridSpec(
            num_scalar_prefetch=0,
            grid=grid,
            in_specs=[
                pl.BlockSpec((None, TM, TK), lambda b, i, j, k: (b, i, k)),
                pl.BlockSpec((TK, TN), lambda b, i, j, k: (k, j)),
            ],
            out_specs=pl.BlockSpec((None, TM, TN), lambda b, i, j, k: (b, i, j)),
            scratch_shapes=[pltpu.VMEM((TM, TN), jnp.float32)],
        ),
        compiler_params=pltpu.CompilerParams(
            dimension_semantics=("parallel", "parallel", "parallel", "arbitrary"),
            vmem_limit_bytes=_vmem_limit_bytes()),
    )(x, w)


# ---------------------------------------------------------------------------
# Flash-style causal attention core (shared body for both layouts).
# Packed causal grid: step axis enumerates only valid (qi, ki) pairs via two
# scalar-prefetch arrays consumed by the index_maps and the kernel body.
# ---------------------------------------------------------------------------
def _flash_kernel(qmap_ref, kmap_ref, q_ref, k_ref, v_ref, o_ref,
                  m_sc, l_sc, acc_sc, *, TQ, TKV):
    s_idx = pl.program_id(2)
    qi = qmap_ref[s_idx]
    ki = kmap_ref[s_idx]

    @pl.when(ki == 0)
    def _init():
        m_sc[...] = jnp.full_like(m_sc, -1e30)
        l_sc[...] = jnp.zeros_like(l_sc)
        acc_sc[...] = jnp.zeros_like(acc_sc)

    q_lo = qi * TQ
    k_lo = ki * TKV
    last_needed = (q_lo + TQ - 1) // TKV     # final KV block for this Q block
    is_diag = (k_lo + TKV - 1) > q_lo        # block straddles the causal diagonal

    def attend(masked):
        # softmax scale is pre-folded into W_query -> no per-score multiply here.
        q = q_ref[...]                                             # (TQ, hd) bf16
        k = k_ref[...]                                             # (TKV, hd) bf16
        s = jax.lax.dot_general(q, k, (((1,), (1,)), ((), ())),
                                preferred_element_type=jnp.float32)  # (TQ, TKV) f32
        if masked:
            # (TQ,1) x (1,TKV) iotas + broadcast compare: a handful of vregs, no
            # full-tile int32 planes.
            row = q_lo + jax.lax.broadcasted_iota(jnp.int32, (TQ, 1), 0)
            col = k_lo + jax.lax.broadcasted_iota(jnp.int32, (1, TKV), 1)
            s = jnp.where(col > row, jnp.float32(-1e30), s)
        m_prev = m_sc[...]
        m_new = jnp.maximum(m_prev, jnp.max(s, axis=-1, keepdims=True))
        alpha = jnp.exp(m_prev - m_new)
        p = jnp.exp(s - m_new)                                     # f32 (v5e-safe EUP)
        l_sc[...] = alpha * l_sc[...] + jnp.sum(p, axis=-1, keepdims=True)
        acc_sc[...] = alpha * acc_sc[...] + jnp.dot(
            p.astype(jnp.bfloat16), v_ref[...],
            preferred_element_type=jnp.float32)
        m_sc[...] = m_new

    @pl.when(is_diag)
    def _diag():
        attend(True)

    @pl.when(jnp.logical_not(is_diag))
    def _interior():
        attend(False)

    @pl.when(ki == last_needed)
    def _finalize():
        inv_l = pl.reciprocal(l_sc[...], approx=True)   # EUP slot, ~free
        o_ref[...] = (acc_sc[...] * inv_l).astype(o_ref.dtype)


def _causal_steps(nq, TQ, TKV):
    """Flattened list of valid (qi, ki) pairs for causal attention (static)."""
    qs, ks = [], []
    for qi in range(nq):
        last = (qi * TQ + TQ - 1) // TKV
        for ki in range(last + 1):
            qs.append(qi)
            ks.append(ki)
    return (jnp.asarray(qs, dtype=jnp.int32), jnp.asarray(ks, dtype=jnp.int32))


def _run_flash(qmap, kmap, operands, in_specs, out_specs, out_shape,
               grid, TQ, TKV, hd):
    kernel = functools.partial(_flash_kernel, TQ=TQ, TKV=TKV)
    return pl.pallas_call(
        kernel,
        out_shape=out_shape,
        grid_spec=pltpu.PrefetchScalarGridSpec(
            num_scalar_prefetch=2,
            grid=grid,
            in_specs=in_specs,
            out_specs=out_specs,
            scratch_shapes=[
                pltpu.VMEM((TQ, 1), jnp.float32),    # running max m
                pltpu.VMEM((TQ, 1), jnp.float32),    # running denom l
                pltpu.VMEM((TQ, hd), jnp.float32),   # running context acc
            ]),
        compiler_params=pltpu.CompilerParams(
            # (B, H) "parallel": shards across v7x's 2 TensorCores, no-op on v5e/v6e.
            dimension_semantics=("parallel", "parallel", "arbitrary"),
            vmem_limit_bytes=_vmem_limit_bytes()),
    )(qmap, kmap, *operands)


def _flash_attention_fused(qkv, *, num_heads, d_out, out_dtype, tq=256, tkv=128):
    """Fused-layout path (head_dim % 128 == 0): Q/K/V and the head are sliced from the
    (B, T, 3*d_out) qkv tensor via the BlockSpec index_maps; output goes directly into a
    (B, T, d_out) array. No HBM split/transpose traffic."""
    B, T, _ = qkv.shape
    H = num_heads
    hd = d_out // H
    TQ = _tile(T, tq, 8)
    TKV = _tile(T, tkv, 8)
    qmap, kmap = _causal_steps(T // TQ, TQ, TKV)
    grid = (B, H, int(qmap.shape[0]))

    # block indices along the feature axis are in units of hd; Q|K|V live at
    # feature offsets {0, d_out, 2*d_out} = {0, H, 2H} blocks.
    def q_map(b, h, s, qm, km):
        return (b, qm[s], h)

    def k_map(b, h, s, qm, km):
        return (b, km[s], H + h)

    def v_map(b, h, s, qm, km):
        return (b, km[s], 2 * H + h)

    in_specs = [
        pl.BlockSpec((None, TQ, hd), q_map),
        pl.BlockSpec((None, TKV, hd), k_map),
        pl.BlockSpec((None, TKV, hd), v_map),
    ]
    out_specs = pl.BlockSpec((None, TQ, hd), q_map)
    out_shape = jax.ShapeDtypeStruct((B, T, d_out), out_dtype)
    return _run_flash(qmap, kmap, (qkv, qkv, qkv), in_specs, out_specs,
                      out_shape, grid, TQ, TKV, hd)


def _flash_attention_split(qkv, *, num_heads, d_out, out_dtype, tq=256, tkv=128):
    """Fallback for head_dim not a multiple of 128 (the (8,128) block rule forbids the
    lane-offset slicing of the fused path). Uses HBM split/transpose around the same kernel.
    TODO(synk): lane-dense multi-head-per-block path (128//hd heads per step) for hd in {32, 64}."""
    B, T, _ = qkv.shape
    H = num_heads
    hd = d_out // H
    q, k, v = jnp.split(qkv, 3, axis=-1)

    def to_heads(t):
        return t.reshape(B, T, H, hd).transpose(0, 2, 1, 3)        # (B, H, T, hd)

    q, k, v = to_heads(q), to_heads(k), to_heads(v)
    TQ = _tile(T, tq, 8)
    TKV = _tile(T, tkv, 8)
    qmap, kmap = _causal_steps(T // TQ, TQ, TKV)
    grid = (B, H, int(qmap.shape[0]))

    def q_map(b, h, s, qm, km):
        return (b, h, qm[s], 0)

    def kv_map(b, h, s, qm, km):
        return (b, h, km[s], 0)

    in_specs = [
        pl.BlockSpec((None, None, TQ, hd), q_map),
        pl.BlockSpec((None, None, TKV, hd), kv_map),
        pl.BlockSpec((None, None, TKV, hd), kv_map),
    ]
    out_specs = pl.BlockSpec((None, None, TQ, hd), q_map)
    out_shape = jax.ShapeDtypeStruct((B, H, T, hd), out_dtype)
    ctx = _run_flash(qmap, kmap, (q, k, v), in_specs, out_specs,
                     out_shape, grid, TQ, TKV, hd)
    return ctx.transpose(0, 2, 1, 3).reshape(B, T, d_out)


# ---------------------------------------------------------------------------
# Module forward
# ---------------------------------------------------------------------------
def prepare_weights(wq, wk, wv, wo, *, num_heads):
    """Hoist out of the step function (weights are static): folds 1/sqrt(head_dim) into
    W_query, fuses the three projections into one matrix, pre-casts everything to bf16."""
    d_out = wq.shape[1]
    head_dim = d_out // num_heads
    scale = 1.0 / math.sqrt(head_dim)
    w_qkv = jnp.concatenate([wq * scale, wk, wv], axis=1).astype(jnp.bfloat16)
    return {"w_qkv": w_qkv, "wo": wo.astype(jnp.bfloat16),
            "num_heads": num_heads, "d_out": d_out}


def multi_head_attention(x, params):
    """x: (B, T, d_in); params from prepare_weights(). Matches PyTorch eval forward.
    TODO(synk): train-mode attention-weight dropout not implemented (eval semantics)."""
    H = params["num_heads"]
    d_out = params["d_out"]
    hd = d_out // H

    x_bf = x.astype(jnp.bfloat16)                                   # cast once, wrapper-side
    qkv = _batched_matmul(x_bf, params["w_qkv"], out_dtype=jnp.bfloat16)  # (B, T, 3*d_out)

    if hd % 128 == 0:
        ctx = _flash_attention_fused(qkv, num_heads=H, d_out=d_out,
                                     out_dtype=jnp.bfloat16)        # (B, T, d_out)
    else:
        ctx = _flash_attention_split(qkv, num_heads=H, d_out=d_out,
                                     out_dtype=jnp.bfloat16)        # (B, T, d_out)

    return _batched_matmul(ctx, params["wo"], out_dtype=x.dtype)    # (B, T, d_out)


# ---------------------------------------------------------------------------
# Pure-JAX reference (f32)
# ---------------------------------------------------------------------------
def reference(x, wq, wk, wv, wo, *, num_heads):
    B, T, d_in = x.shape
    d_out = wq.shape[1]
    hd = d_out // num_heads
    q = (x @ wq).reshape(B, T, num_heads, hd).transpose(0, 2, 1, 3)
    k = (x @ wk).reshape(B, T, num_heads, hd).transpose(0, 2, 1, 3)
    v = (x @ wv).reshape(B, T, num_heads, hd).transpose(0, 2, 1, 3)
    scores = jnp.einsum("bhqd,bhkd->bhqk", q, k) / math.sqrt(hd)
    mask = jnp.triu(jnp.ones((T, T), bool), k=1)
    scores = jnp.where(mask, -jnp.inf, scores)
    attn = jax.nn.softmax(scores, axis=-1)
    ctx = jnp.einsum("bhqk,bhkd->bhqd", attn, v)
    ctx = ctx.transpose(0, 2, 1, 3).reshape(B, T, d_out)
    return ctx @ wo


if __name__ == "__main__":
    def check(B, T, d_in, d_out, num_heads):
        key = jax.random.PRNGKey(0)
        kx, kq, kk, kv, ko = jax.random.split(key, 5)
        x = jax.random.normal(kx, (B, T, d_in), dtype=jnp.float32)
        si = 1.0 / math.sqrt(d_in)
        so = 1.0 / math.sqrt(d_out)
        wq = jax.random.uniform(kq, (d_in, d_out), jnp.float32, -si, si)
        wk = jax.random.uniform(kk, (d_in, d_out), jnp.float32, -si, si)
        wv = jax.random.uniform(kv, (d_in, d_out), jnp.float32, -si, si)
        wo = jax.random.uniform(ko, (d_out, d_out), jnp.float32, -so, so)

        params = prepare_weights(wq, wk, wv, wo, num_heads=num_heads)
        out = jax.block_until_ready(multi_head_attention(x, params))
        ref = reference(x, wq, wk, wv, wo, num_heads=num_heads)

        assert out.shape == (B, T, d_out)
        # bf16 MXU inputs -> loosened tolerance vs the f32 reference
        assert jnp.allclose(out, ref, atol=5e-2, rtol=5e-2), \
            f"mismatch vs reference at shape {(B, T, d_in, d_out, num_heads)}"

    # Small shapes consistent with the module (head_dim=8 -> transpose-fallback flash path).
    check(B=2, T=8, d_in=32, d_out=32, num_heads=4)
    # Lane-aligned shapes (head_dim=128) exercising the fused-layout flash path, the packed
    # causal grid (diagonal + interior blocks), and the M/N-tiled projection kernels.
    check(B=1, T=384, d_in=128, d_out=256, num_heads=2)

    print("KERNEL_OK")
</pallas_src>

<mosaic_0001>
module attributes {stable_mosaic.version = 11 : i64} {
  func.func @_proj_kernel(%arg0: i32, %arg1: i32, %arg2: i32, %arg3: i32, %arg4: memref<1x8x32xbf16, #tpu.memory_space<vmem>>, %arg5: memref<32x96xbf16, #tpu.memory_space<vmem>>, %arg6: memref<1x8x96xbf16, #tpu.memory_space<vmem>>, %arg7: memref<8x96xf32, #tpu.memory_space<vmem>>) attributes {dimension_semantics = [#tpu.dimension_semantics<parallel>, #tpu.dimension_semantics<parallel>, #tpu.dimension_semantics<parallel>, #tpu.dimension_semantics<arbitrary>], iteration_bounds = array<i64: 2, 1, 1, 1>, scalar_prefetch = 0 : i64, scratch_operands = 1 : i64, tpu.core_type = #tpu.core_type<tc>, window_params = [{transform_indices = @transform_0, window_bounds = array<i64: 1, 8, 32>}, {transform_indices = @transform_1, window_bounds = array<i64: 32, 96>}, {transform_indices = @transform_2, window_bounds = array<i64: 1, 8, 96>}]} {
    %c0_i32 = arith.constant 0 : i32
    %0 = arith.cmpi eq, %arg3, %c0_i32 : i32
    %1 = arith.extui %0 : i1 to i32
    %c0_i32_0 = arith.constant 0 : i32
    %2 = arith.cmpi ne, %1, %c0_i32_0 : i32
    scf.if %2 {
      %cst_11 = arith.constant 0.000000e+00 : f32
      %13 = vector.broadcast %cst_11 : f32 to vector<8x96xf32>
      %c0_12 = arith.constant 0 : index
      %c0_13 = arith.constant 0 : index
      %14 = vector.load %arg7[%c0_12, %c0_13] : memref<8x96xf32, #tpu.memory_space<vmem>>, vector<8x96xf32>
      tpu.vector_store %arg7[%c0_12, %c0_13], %13 {strides = array<i32>} : memref<8x96xf32, #tpu.memory_space<vmem>>, vector<8x96xf32>,
    } else {
    }
    %c0 = arith.constant 0 : index
    %c0_1 = arith.constant 0 : index
    %3 = vector.load %arg7[%c0, %c0_1] : memref<8x96xf32, #tpu.memory_space<vmem>>, vector<8x96xf32>
    %c0_2 = arith.constant 0 : index
    %c0_3 = arith.constant 0 : index
    %c0_4 = arith.constant 0 : index
    %4 = vector.load %arg4[%c0_2, %c0_3, %c0_4] : memref<1x8x32xbf16, #tpu.memory_space<vmem>>, vector<1x8x32xbf16>
    %5 = vector.shape_cast %4 : vector<1x8x32xbf16> to vector<8x32xbf16>
    %c0_5 = arith.constant 0 : index
    %c0_6 = arith.constant 0 : index
    %6 = vector.load %arg5[%c0_5, %c0_6] : memref<32x96xbf16, #tpu.memory_space<vmem>>, vector<32x96xbf16>
    %cst = arith.constant dense<0.000000e+00> : vector<8x96xf32>
    %7 = tpu.matmul %5, %6, %cst {dimension_numbers = #tpu.dot_dimension_numbers<[1], [0], [0], [1], [0, 0, 1, 1], [], []>} : vector<8x32xbf16>, vector<32x96xbf16>, vector<8x96xf32> -> vector<8x96xf32>
    %8 = arith.addf %3, %7 : vector<8x96xf32>
    %c0_7 = arith.constant 0 : index
    %c0_8 = arith.constant 0 : index
    %9 = vector.load %arg7[%c0_7, %c0_8] : memref<8x96xf32, #tpu.memory_space<vmem>>, vector<8x96xf32>
    tpu.vector_store %arg7[%c0_7, %c0_8], %8 {strides = array<i32>} : memref<8x96xf32, #tpu.memory_space<vmem>>, vector<8x96xf32>,
    %c0_i32_9 = arith.constant 0 : i32
    %10 = arith.cmpi eq, %arg3, %c0_i32_9 : i32
    %11 = arith.extui %10 : i1 to i32
    %c0_i32_10 = arith.constant 0 : i32
    %12 = arith.cmpi ne, %11, %c0_i32_10 : i32
    scf.if %12 {
      %c0_11 = arith.constant 0 : index
      %c0_12 = arith.constant 0 : index
      %13 = vector.load %arg7[%c0_11, %c0_12] : memref<8x96xf32, #tpu.memory_space<vmem>>, vector<8x96xf32>
      %14 = arith.truncf %13 : vector<8x96xf32> to vector<8x96xbf16>
      %c0_13 = arith.constant 0 : index
      %c0_14 = arith.constant 0 : index
      %c0_15 = arith.constant 0 : index
      %15 = vector.load %arg6[%c0_13, %c0_14, %c0_15] : memref<1x8x96xbf16, #tpu.memory_space<vmem>>, vector<1x8x96xbf16>
      %16 = vector.shape_cast %15 : vector<1x8x96xbf16> to vector<8x96xbf16>
      %17 = vector.shape_cast %14 : vector<8x96xbf16> to vector<1x8x96xbf16>
      tpu.vector_store %arg6[%c0_13, %c0_14, %c0_15], %17 {strides = array<i32>} : memref<1x8x96xbf16, #tpu.memory_space<vmem>>, vector<1x8x96xbf16>,
    } else {
    }
    return
  }
  func.func @transform_0(%arg0: i32, %arg1: i32, %arg2: i32, %arg3: i32) -> (i32, i32, i32) {
    %c0_i32 = arith.constant 0 : i32
    return %arg0, %arg1, %arg3 : i32, i32, i32
  }
  func.func @transform_1(%arg0: i32, %arg1: i32, %arg2: i32, %arg3: i32) -> (i32, i32) {
    %c0_i32 = arith.constant 0 : i32
    return %arg3, %arg2 : i32, i32
  }
  func.func @transform_2(%arg0: i32, %arg1: i32, %arg2: i32, %arg3: i32) -> (i32, i32, i32) {
    %c0_i32 = arith.constant 0 : i32
    return %arg0, %arg1, %arg2 : i32, i32, i32
  }
}

</mosaic_0001>

<llo_original>
// kernel: tpu_custom_call.1
$region0: #{tpu_custom_call.1}
  #allocation0 [shape = 'u32[]', space=smem, size = 0x4, offset = 0x4, fixed_abs, tag = 'smem constant byte address 0x4 - core index']
  #allocation1 [shape = 'u32[144,128]{1,0:T(1,128)}', space=vmem, size = 0x12000, scoped, tag = 'internal scratch']
  #allocation2 [shape = 'f32[8,96]{1,0:T(8,128)}', space=vmem, size = 0x1000, scoped, tag = 'scratch operand']
  %s0 = inlined_call_operand.hbm [shape: bf16[2,8,32], index: 0, kind: input, shape index: {}]
  %s1 = inlined_call_operand.hbm [shape: bf16[32,96], index: 1, kind: input, shape index: {}]
  %s2 = inlined_call_operand.hbm [shape: bf16[2,8,96], index: 2, kind: output, shape index: {}]
  %s3 = sld [smem:[#allocation0]]
  $region57: #{tpu_custom_call.1} parent=0
    _
  %s5 = ssub.s32 1, %s3
  %s6 = scalar_select 0, %s5, %s3
  $region1: #{tpu_custom_call.1} parent=0
    #allocation3 [shape = 'u8[4096]{0}', space=vmem, size = 0x1000, scoped, tag = 'input window, operand 0']
    #allocation4 [shape = 's32[2]{0}', space=sflag, size = 0x8, scoped, tag = 'scoped memory for tpu_custom_call.1']
    #allocation5 [shape = 's32[2]{0}', space=sflag, size = 0x8, scoped, tag = 'scoped memory for tpu_custom_call.1']
    #allocation6 [shape = 'u8[8192]{0}', space=vmem, size = 0x2000, scoped, tag = 'input window, operand 1, single buffered']
    #allocation7 [shape = 's32[1]{0}', space=sflag, size = 0x4, scoped, tag = 'scoped memory for tpu_custom_call.1']
    #allocation8 [shape = 'u8[4096]{0}', space=vmem, size = 0x1000, scoped, tag = 'output window, operand 0']
    %7 = vsyncpa [#allocation4], 0
    %s8 = scalar_lea.sflag [#allocation4], 1
    %9 = vsyncpa %s8, 0
    %10 = vsyncpa [#allocation7], 0
    %11 = vsyncpa [#allocation5], 0
    %s12 = scalar_lea.sflag [#allocation5], 1
    %13 = vsyncpa %s12, 0
    loop: start=0, step=1, limit=4
    $region2: #{tpu_custom_call.1} parent=1 // loop_pre_header
      _
    $region3: #{tpu_custom_call.1} parent=1 // loop_header
      %s15 = sphi 0, %s19
      %p16 = scmp.ge.s32.totalorder %s15, 4
      %s22 = sphi 0, %s48
      %s23 = sphi 0, %s44
      %s24 = sphi 0, %s40
      %s25 = sphi 0, %s36
      %s26 = sphi 0, %s22
      %s27 = sphi 0, %s23
      %s28 = sphi 0, %s24
      %s29 = sphi 0, %s25
      %s30 = sphi 0, %s26
      %s31 = sphi 0, %s27
      %s32 = sphi 0, %s28
      %s33 = sphi 0, %s29
      %s55 = sphi 0, %s57
      %s58 = sphi 0, %s55
      %s59 = sphi 0, %s58
      %s75 = sphi 0, %s59
      %s83 = sphi 0, %s85
      %s86 = sphi 0, %s83
      %s87 = sphi 0, %s86
      %s103 = sphi 0, %s87
      %s113 = sphi 0, %s115
      %s116 = sphi 0, %s113
      %s117 = sphi 0, %s116
      %s133 = sphi 0, %s117
    $region4: #{tpu_custom_call.1} parent=1 // loop_header_branch
      %18 = sbr.rel (%p16) target = $region8
    $region5: #{tpu_custom_call.1} parent=1 // loop_body
      %s20 = ssub.s32 %s15, 1
      %s21 = ssub.s32 %s15, 2
      %s34 = sadd.s32 1, %s25
      %p35 = scmp.ge.s32.totalorder %s34, 1
      %s36 = scalar_select %p35, 0, %s34
      %s37 = sadd.s32 1, %s24
      %s38 = scalar_select %p35, %s37, %s24
      %p39 = scmp.ge.s32.totalorder %s38, 1
      %s40 = scalar_select %p39, 0, %s38
      %s41 = sadd.s32 1, %s23
      %s42 = scalar_select %p39, %s41, %s23
      %p43 = scmp.ge.s32.totalorder %s42, 1
      %s44 = scalar_select %p43, 0, %s42
      %s45 = sadd.s32 1, %s22
      %s46 = scalar_select %p43, %s45, %s22
      %p47 = scmp.ge.s32.totalorder %s46, 2
      %s48 = scalar_select %p47, 0, %s46
      %s49 = ssub.s32 %s22, %s48
      %s50 = ssub.s32 %s23, %s44
      %s51 = sor.u32 %s49, %s50
      %s52 = ssub.s32 %s25, %s36
      %s53 = sor.u32 %s51, %s52
      %p54 = scmp.eq.s32.totalorder %s53, 0
      %s56 = sadd.s32 %s55, 1
      %s57 = scalar_select %p54, %s55, %s56
      %p60 = pneg %p54
      %p61 = scmp.eq.s32.totalorder %s15, 1
      %p62 = por %p60, %p61
      %p63 = scmp.ne.s32.totalorder %s55, %s58
      %p64 = scmp.eq.s32.totalorder %s15, 0
      %p65 = por %p63, %p64
      %p66 = scmp.ne.s32.totalorder %s55, %s58
      %p67 = scmp.eq.s32.totalorder %s20, 1
      %p68 = por %p66, %p67
      %p69 = scmp.ne.s32.totalorder %s58, %s59
      %p70 = scmp.eq.s32.totalorder %s20, 0
      %p71 = por %p69, %p70
      %p72 = scmp.ne.s32.totalorder %s58, %s59
      %p73 = scmp.eq.s32.totalorder %s21, 1
      %p74 = por %p72, %p73
      %p76 = scmp.ne.s32.totalorder %s59, %s75
      %p77 = scmp.eq.s32.totalorder %s21, 0
      %p78 = por %p76, %p77
      %s79 = ssub.s32 %s25, %s36
      %s80 = ssub.s32 %s24, %s40
      %s81 = sor.u32 %s79, %s80
      %p82 = scmp.eq.s32.totalorder %s81, 0
      %s84 = sadd.s32 %s83, 1
      %s85 = scalar_select %p82, %s83, %s84
      %p88 = pneg %p82
      %p89 = scmp.eq.s32.totalorder %s15, 1
      %p90 = por %p88, %p89
      %p91 = scmp.ne.s32.totalorder %s83, %s86
      %p92 = scmp.eq.s32.totalorder %s15, 0
      %p93 = por %p91, %p92
      %p94 = scmp.ne.s32.totalorder %s83, %s86
      %p95 = scmp.eq.s32.totalorder %s20, 1
      %p96 = por %p94, %p95
      %p97 = scmp.ne.s32.totalorder %s86, %s87
      %p98 = scmp.eq.s32.totalorder %s20, 0
      %p99 = por %p97, %p98
      %p100 = scmp.ne.s32.totalorder %s86, %s87
      %p101 = scmp.eq.s32.totalorder %s21, 1
      %p102 = por %p100, %p101
      %p104 = scmp.ne.s32.totalorder %s87, %s103
      %p105 = scmp.eq.s32.totalorder %s21, 0
      %p106 = por %p104, %p105
      %s107 = ssub.s32 %s22, %s48
      %s108 = ssub.s32 %s23, %s44
      %s109 = sor.u32 %s107, %s108
      %s110 = ssub.s32 %s24, %s40
      %s111 = sor.u32 %s109, %s110
      %p112 = scmp.eq.s32.totalorder %s111, 0
      %s114 = sadd.s32 %s113, 1
      %s115 = scalar_select %p112, %s113, %s114
      %p118 = pneg %p112
      %p119 = scmp.eq.s32.totalorder %s15, 1
      %p120 = por %p118, %p119
      %p121 = scmp.ne.s32.totalorder %s113, %s116
      %p122 = scmp.eq.s32.totalorder %s15, 0
      %p123 = por %p121, %p122
      %p124 = scmp.ne.s32.totalorder %s113, %s116
      %p125 = scmp.eq.s32.totalorder %s20, 1
      %p126 = por %p124, %p125
      %p127 = scmp.ne.s32.totalorder %s116, %s117
      %p128 = scmp.eq.s32.totalorder %s20, 0
      %p129 = por %p127, %p128
      %p130 = scmp.ne.s32.totalorder %s116, %s117
      %p131 = scmp.eq.s32.totalorder %s21, 1
      %p132 = por %p130, %p131
      %p134 = scmp.ne.s32.totalorder %s117, %s133
      %p135 = scmp.eq.s32.totalorder %s21, 0
      %p136 = por %p134, %p135
      %p137 = scmp.le.s32.totalorder 1, %s15
      %p138 = scmp.lt.s32.totalorder %s15, 3
      %p139 = pnand %p137, %p138
      %p140 = pneg %p139
      // Predicated region
      $region9: #{tpu_custom_call.1} parent=5 // pred_check
        _
      $region10: #{tpu_custom_call.1} parent=5 // pred_check_branch
        %142 = sbr.rel (%p139) target = $region12
      $region11: #{tpu_custom_call.1} parent=5 // pred_region
        %s143 = ssub.s32 %s15, 1
        // Predicated region
        $region13: #{tpu_custom_call.1} parent=11 // pred_check
          %p144 = pneg %p99
        $region14: #{tpu_custom_call.1} parent=11 // pred_check_branch
          %146 = sbr.rel (%p144) target = $region16
        $region15: #{tpu_custom_call.1} parent=11 // pred_region
          %s147 = smul.u32 4, %s29
          %s149 = ssub.s32 256, 256
          %150 = vsyncadd [#allocation7], %s149
          %s151 = sadd.s32 %s28, %s147
          %s152 = smul.addr %s151, 64
          %s153 = scalar_lea.hbm %s1, %s152
          %s154 = sshll.u32 [#allocation6], 4
          %s155 = int_to_ptr.vmem [resolvable:$true] %s154
          %160 = dma.hbm_to_vmem [thread:$0]  %s153, 256, %s155, [#allocation7], 64, 64, 4
        $region16: #{tpu_custom_call.1} parent=11 // pred_fallthru
          _
      $region12: #{tpu_custom_call.1} parent=5 // pred_fallthru
        _
      %p161 = scmp.lt.s32.totalorder %s15, 2
      // Predicated region
      $region17: #{tpu_custom_call.1} parent=5 // pred_check
        %p162 = pneg %p161
      $region18: #{tpu_custom_call.1} parent=5 // pred_check_branch
        %164 = sbr.rel (%p162) target = $region20
      $region19: #{tpu_custom_call.1} parent=5 // pred_region
        // Predicated region
        $region21: #{tpu_custom_call.1} parent=19 // pred_check
          %p165 = pneg %p65
        $region22: #{tpu_custom_call.1} parent=19 // pred_check_branch
          %167 = sbr.rel (%p165) target = $region24
        $region23: #{tpu_custom_call.1} parent=19 // pred_region
          %s168 = sand.u32 %s55, 1
          %s169 = scalar_lea.sflag [#allocation4], %s168
          %s170 = sand.u32 %s55, 1
          %s171 = smul.addr %s170, 4
          %s172 = scalar_lea.vmem [#allocation3], %s171
          %s174 = ssub.s32 64, 64
          %175 = vsyncadd %s169, %s174
          %s176 = sadd.s32 %s25, %s23
          %s177 = sadd.s32 %s176, %s22
          %s178 = smul.addr %s177, 64
          %s179 = scalar_lea.hbm %s0, %s178
          %s181 = sshll.u32 %s172, 4
          %s182 = int_to_ptr.vmem [resolvable:$true] %s181
          %184 = dma.hbm_to_vmem [thread:$0]  %s179, 64, %s182, %s169
        $region24: #{tpu_custom_call.1} parent=19 // pred_fallthru
          _
      $region20: #{tpu_custom_call.1} parent=5 // pred_fallthru
        _
      %p185 = scmp.le.s32.totalorder 1, %s15
      %p186 = scmp.lt.s32.totalorder %s15, 3
      %p187 = pnand %p185, %p186
      %p188 = pneg %p187
      // Predicated region
      $region25: #{tpu_custom_call.1} parent=5 // pred_check
        _
      $region26: #{tpu_custom_call.1} parent=5 // pred_check_branch
        %190 = sbr.rel (%p187) target = $region28
      $region27: #{tpu_custom_call.1} parent=5 // pred_region
        %s191 = ssub.s32 %s15, 1
        %s192 = sand.u32 %s58, 1
        %s193 = scalar_lea.sflag [#allocation4], %s192
        %s194 = sand.u32 %s58, 1
        %s195 = smul.addr %s194, 4
        %s196 = scalar_lea.vmem [#allocation3], %s195
        // Predicated region
        $region29: #{tpu_custom_call.1} parent=27 // pred_check
          %p197 = pneg %p71
        $region30: #{tpu_custom_call.1} parent=27 // pred_check_branch
          %199 = sbr.rel (%p197) target = $region32
        $region31: #{tpu_custom_call.1} parent=27 // pred_region
          %200 = dma.done %s193, 64
        $region32: #{tpu_custom_call.1} parent=27 // pred_fallthru
          _
        // Predicated region
        $region33: #{tpu_custom_call.1} parent=27 // pred_check
          %p201 = pneg %p99
        $region34: #{tpu_custom_call.1} parent=27 // pred_check_branch
          %203 = sbr.rel (%p201) target = $region36
        $region35: #{tpu_custom_call.1} parent=27 // pred_region
          %204 = dma.done [#allocation7], 256
        $region36: #{tpu_custom_call.1} parent=27 // pred_fallthru
          _
        %s205 = sand.u32 %s58, 1
        %s206 = scalar_lea.sflag [#allocation4], %s205
        %s207 = sand.u32 %s58, 1
        %s208 = smul.addr %s207, 4
        %s209 = scalar_lea.vmem [#allocation3], %s208
        %p210 = pneg %p71
        %p211 = pneg %p68
        %p212 = pneg %p99
        %p213 = pneg %p96
        %p214 = pneg %p129
        %p215 = pneg %p126
        %s216 = sand.u32 %s116, 1
        %s217 = scalar_lea.sflag [#allocation5], %s216
        %s218 = sand.u32 %s116, 1
        %s219 = smul.addr %s218, 4
        %s220 = scalar_lea.vmem [#allocation8], %s219
        %s221 = smul.u32 4, %s29
        %p223 = scmp.eq.s32.totalorder %s29, 0
        // Predicated region
        $region37: #{tpu_custom_call.1} parent=27 // pred_check
          %p224 = pneg %p223
        $region38: #{tpu_custom_call.1} parent=27 // pred_check_branch
          %226 = sbr.rel (%p224) target = $region40
        $region39: #{tpu_custom_call.1} parent=27 // pred_region
          %vm227 = vcmask 785408
          %228 = vst.msk [vmem:[#allocation2] sm:$0xff] %vm227, 0.0
        $region40: #{tpu_custom_call.1} parent=27 // pred_fallthru
          _
        %v229 = vld [vmem:[#allocation2] sm:$0xff]
        %v230 = vld [vmem:[%s196] sm:$0xf]
        %v231 = vld [vmem:[#allocation6] sm:$0xf]
        %v232 = vld [vmem:[#allocation6 + $0x4] sm:$0xf]
        %v233 = vld [vmem:[#allocation6 + $0x8] sm:$0xf]
        %v234 = vld [vmem:[#allocation6 + $0xc] sm:$0xf]
        %v239 = vunpack.c.l.b16 %v231
        %v240 = vunpack.c.l.b16 %v232
        %v241 = vunpack.c.l.b16 %v233
        %v242 = vunpack.c.l.b16 %v234
        %v243 = vpack.c.b16 %v240, %v239
        %v244 = vpack.c.b16 %v242, %v241
        %vm247 = vcmask 261120
        %v249 = vsel %vm247, %v230, 0
        %251 = vmatprep.subr.bf16.mxu0 0
        %252 = vmatpush1.bf16.msra.mxu0 0
        %253 = vmatprep.subr.bf16.mxu0 0
        %254 = vmatpush1.bf16.msra.mxu0 0
        %255 = vmatprep.subr.bf16.mxu0 0
        %256 = vmatpush1.bf16.msra.mxu0 0
        %257 = vmatprep.subr.bf16.mxu0 0
        %258 = vmatpush1.bf16.msra.mxu0 0
        %259 = vmatprep.subr.bf16.mxu0 0
        %260 = vmatpush1.bf16.msra.mxu0 0
        %261 = vmatprep.subr.bf16.mxu0 0
        %262 = vmatpush1.bf16.msra.mxu0 0
        %263 = vmatprep.subr.bf16.mxu0 0
        %264 = vmatpush1.bf16.msra.mxu0 %v244
        %265 = vmatprep.subr.bf16.mxu0 0
        %266 = vmatpush1.bf16.msra.mxu0 %v243
        %267 = vmatprep.subr.bf16.mxu0 0
        %268 = vmatpush2.bf16.msra.mxu0 0
        %269 = vmatprep.subr.bf16.mxu0 0
        %270 = vmatpush2.bf16.msra.mxu0 0
        %271 = vmatprep.subr.bf16.mxu0 0
        %272 = vmatpush2.bf16.msra.mxu0 0
        %273 = vmatprep.subr.bf16.mxu0 0
        %274 = vmatpush2.bf16.msra.mxu0 0
        %275 = vmatprep.subr.bf16.mxu0 0
        %276 = vmatpush2.bf16.msra.mxu0 0
        %277 = vmatprep.subr.bf16.mxu0 0
        %278 = vmatpush2.bf16.msra.mxu0 0
        %279 = vmatprep.subr.bf16.mxu0 0
        %280 = vmatpush2.bf16.msra.mxu0 0
        %281 = vmatprep.subr.bf16.mxu0 0
        %282 = vmatpush2.bf16.msra.mxu0 0
        %283 = vmatprep.mubr.bf16.mxu0 0
        %284 = vmatmul.mubr.bf16.gmra.mxu0 %v249
        %v285 = vpop.f32.mrf.mxu0
        %v286 = vadd.f32 0.0, %v285
        %v287 = vpop.f32.mrf.mxu0
        %v288 = vpop.f32.mrf.mxu0
        %v289 = vpop.f32.mrf.mxu0
        %290 = vdwg.mxu0
        %v291 = vadd.f32 %v229, %v286
        %vm292 = vcmask 785408
        %293 = vst.msk [vmem:[#allocation2] sm:$0xff] %vm292, %v291
        // Predicated region
        $region41: #{tpu_custom_call.1} parent=27 // pred_check
          %p294 = pneg %p223
        $region42: #{tpu_custom_call.1} parent=27 // pred_check_branch
          %296 = sbr.rel (%p294) target = $region44
        $region43: #{tpu_custom_call.1} parent=27 // pred_region
          %v297 = vld [vmem:[#allocation2] sm:$0xff]
          %v298 = vpack.c.bf16 %v297, %v297
          %vm299 = vcmask 781312
          %300 = vst.msk [vmem:[%s220] sm:$0xf] %vm299, %v298
        $region44: #{tpu_custom_call.1} parent=27 // pred_fallthru
          _
        %s301 = sand.u32 %s116, 1
        %s302 = scalar_lea.sflag [#allocation5], %s301
        %s303 = sand.u32 %s116, 1
        %s304 = smul.addr %s303, 4
        %s305 = scalar_lea.vmem [#allocation8], %s304
        // Predicated region
        $region45: #{tpu_custom_call.1} parent=27 // pred_check
          %p306 = pneg %p126
        $region46: #{tpu_custom_call.1} parent=27 // pred_check_branch
          %308 = sbr.rel (%p306) target = $region48
        $region47: #{tpu_custom_call.1} parent=27 // pred_region
          %s310 = ssub.s32 64, 64
          %311 = vsyncadd %s302, %s310
          %s312 = sadd.s32 %s28, %s27
          %s313 = sadd.s32 %s312, %s26
          %s314 = smul.addr %s313, 64
          %s315 = scalar_lea.hbm %s2, %s314
          %s317 = sshll.u32 %s305, 4
          %s318 = int_to_ptr.vmem [resolvable:$true] %s317
          %320 = dma.vmem_to_hbm [thread:$0]  %s318, 64, %s315, %s302
        $region48: #{tpu_custom_call.1} parent=27 // pred_fallthru
          _
      $region28: #{tpu_custom_call.1} parent=5 // pred_fallthru
        _
      %p321 = scmp.le.s32.totalorder 2, %s15
      // Predicated region
      $region49: #{tpu_custom_call.1} parent=5 // pred_check
        %p322 = pneg %p321
      $region50: #{tpu_custom_call.1} parent=5 // pred_check_branch
        %324 = sbr.rel (%p322) target = $region52
      $region51: #{tpu_custom_call.1} parent=5 // pred_region
        %s325 = ssub.s32 %s15, 2
        // Predicated region
        $region53: #{tpu_custom_call.1} parent=51 // pred_check
          %p326 = pneg %p132
        $region54: #{tpu_custom_call.1} parent=51 // pred_check_branch
          %328 = sbr.rel (%p326) target = $region56
        $region55: #{tpu_custom_call.1} parent=51 // pred_region
          %s329 = sand.u32 %s117, 1
          %s330 = scalar_lea.sflag [#allocation5], %s329
          %s331 = sand.u32 %s117, 1
          %s332 = smul.addr %s331, 4
          %s333 = scalar_lea.vmem [#allocation8], %s332
          %334 = dma.done %s330, 64
        $region56: #{tpu_custom_call.1} parent=51 // pred_fallthru
          _
      $region52: #{tpu_custom_call.1} parent=5 // pred_fallthru
        _
    $region6: #{tpu_custom_call.1} parent=1 // loop_footer
      %s19 = sadd.s32 1, %s15
    $region7: #{tpu_custom_call.1} parent=1 // loop_footer_branch
      %14 = sbr.rel target = $region3
    $region8: #{tpu_custom_call.1} parent=1 // loop_exit
      _
    %335 = vsyncpa [#allocation4], 1
    %s336 = scalar_lea.sflag [#allocation4], 1
    %337 = vsyncpa %s336, 1
    %338 = vsyncpa [#allocation7], 1
    %339 = vsyncpa [#allocation5], 1
    %s340 = scalar_lea.sflag [#allocation5], 1
    %341 = vsyncpa %s340, 1

</llo_original>
